<compile_context>
chip_gen: v6e
topology: v6e:2x2x1
jax: 0.10.0
libtpu: 0.0.40
codegen_flags: <defaults>
</compile_context>

<pallas_src>
import functools

import jax
import jax.numpy as jnp
from jax import lax
from jax.experimental import pallas as pl
from jax.experimental.pallas import tpu as pltpu

_LANE = 128
_VMEM_LIMIT_BYTES = 48 * 1024 * 1024   # requested scoped VMEM (< 64 MiB v7x physical)
_VMEM_BUDGET = 24 * 1024 * 1024        # what explicit buffers + temporaries are sized to


def _sublane(dtype):
    # sublane packing: 8 for 32-bit, 16 for 16-bit, 32 for 8-bit dtypes
    return {4: 8, 2: 16, 1: 32}.get(jnp.dtype(dtype).itemsize, 8)


def _pick_tiling(n, bytes_per_col, budget):
    """(padded_n, tile_n): lane-aligned, VMEM-budgeted, minimal padding waste."""
    n_lane = pl.cdiv(n, _LANE) * _LANE
    max_tn = max(_LANE, (budget // max(bytes_per_col, 1)) // _LANE * _LANE)
    if n_lane <= max_tn:                       # whole lane-padded N as one tile
        return n_lane, n_lane
    best = None
    tn = _LANE
    while tn <= max_tn:
        padded = pl.cdiv(n, tn) * tn
        key = (padded, -tn)                    # least padding, then biggest tile
        if best is None or key < best[0]:
            best = (key, padded, tn)
        tn += _LANE
    return best[1], best[2]


# -------------------- spearman: single-pass (fits VMEM) --------------------
def _spearman_single_kernel(pred_ref, targ_ref, out_ref, *, b_true, n_true):
    p = pred_ref[...].astype(jnp.float32)          # (B_pad, N_pad), zero padded
    t = targ_ref[...].astype(jnp.float32)
    row = lax.broadcasted_iota(jnp.int32, p.shape, 0)
    col = lax.broadcasted_iota(jnp.int32, p.shape, 1)
    valid = (row < b_true) & (col < n_true)
    m = float(b_true * n_true)

    # Inputs are zero padded -> plain sums give the true totals.
    mean_p = jnp.sum(p) / m
    mean_t = jnp.sum(t) / m
    pc = jnp.where(valid, p - mean_p, 0.0)
    tc = jnp.where(valid, t - mean_t, 0.0)
    std_p = jnp.sqrt(jnp.sum(pc * pc) / (m - 1.0))   # torch.std default: unbiased
    std_t = jnp.sqrt(jnp.sum(tc * tc) / (m - 1.0))

    # soft_rank = sigmoid(1.83 * (x - mean)/2 * std); sigmoid(a) = 0.5*(1+tanh(a/2))
    # so tanh argument = (1.83/4) * (x - mean) * std = 0.4575 * (x - mean) * std.
    rp = jnp.where(valid, 0.5 * (1.0 + jnp.tanh(0.4575 * pc * std_p)), 0.0)
    rt = jnp.where(valid, 0.5 * (1.0 + jnp.tanh(0.4575 * tc * std_t)), 0.0)

    rpn = jnp.where(valid, rp - jnp.sum(rp) / m, 0.0)
    rtn = jnp.where(valid, rt - jnp.sum(rt) / m, 0.0)
    norm_p = jnp.sqrt(jnp.sum(rpn * rpn))
    norm_t = jnp.sqrt(jnp.sum(rtn * rtn))
    corr = jnp.sum(rpn * rtn) / ((norm_p + 1e-8) * (norm_t + 1e-8))
    # ICLoss returns -|corr|; InverseICLoss negates => +|corr|
    out_ref[0, 0] = jnp.abs(corr)


# ------------------ spearman: streaming fallback (2 passes) -----------------
def _spearman_stream_kernel(pred_ref, targ_ref, out_ref, acc_ref, stats_ref,
                            *, b_true, n_true, tn):
    phase = pl.program_id(0)
    j = pl.program_id(1)
    n_tiles = pl.num_programs(1)
    m = float(b_true * n_true)

    p = pred_ref[...].astype(jnp.float32)          # (B_pad, TN), zero padded
    t = targ_ref[...].astype(jnp.float32)

    @pl.when((phase == 0) & (j == 0))
    def _():
        acc_ref[...] = jnp.zeros_like(acc_ref)

    # phase 0: raw moments -- no mask needed, padded entries are exactly zero.
    @pl.when(phase == 0)
    def _():
        acc_ref[0, :, :] += p
        acc_ref[1, :, :] += p * p
        acc_ref[2, :, :] += t
        acc_ref[3, :, :] += t * t

    # phase 1 entry: finalize mean/std into SMEM, reset the vector accumulators.
    @pl.when((phase == 1) & (j == 0))
    def _():
        sp = jnp.sum(acc_ref[0, :, :])
        sp2 = jnp.sum(acc_ref[1, :, :])
        st = jnp.sum(acc_ref[2, :, :])
        st2 = jnp.sum(acc_ref[3, :, :])
        stats_ref[0] = sp / m                                           # mean(pred)
        stats_ref[1] = jnp.sqrt(jnp.maximum((sp2 - sp * sp / m) / (m - 1.0), 0.0))
        stats_ref[2] = st / m                                           # mean(targ)
        stats_ref[3] = jnp.sqrt(jnp.maximum((st2 - st * st / m) / (m - 1.0), 0.0))
        acc_ref[...] = jnp.zeros_like(acc_ref)

    # phase 1: rank moments (mask needed: padded entries would rank to 0.5).
    @pl.when(phase == 1)
    def _():
        row = lax.broadcasted_iota(jnp.int32, p.shape, 0)
        col = lax.broadcasted_iota(jnp.int32, p.shape, 1) + j * tn
        valid = (row < b_true) & (col < n_true)
        mean_p, std_p = stats_ref[0], stats_ref[1]
        mean_t, std_t = stats_ref[2], stats_ref[3]
        rp = 0.5 * (1.0 + jnp.tanh(0.4575 * (p - mean_p) * std_p))
        rt = 0.5 * (1.0 + jnp.tanh(0.4575 * (t - mean_t) * std_t))
        # center by 0.5 (ranks live in (0,1)) before second moments: less f32
        # cancellation in the single-pass covariance/norm formulas.
        rp = jnp.where(valid, rp - 0.5, 0.0)
        rt = jnp.where(valid, rt - 0.5, 0.0)
        acc_ref[0, :, :] += rp
        acc_ref[1, :, :] += rt
        acc_ref[2, :, :] += rp * rp
        acc_ref[3, :, :] += rt * rt
        acc_ref[4, :, :] += rp * rt

    @pl.when((phase == 1) & (j == n_tiles - 1))
    def _():
        srp = jnp.sum(acc_ref[0, :, :])
        srt = jnp.sum(acc_ref[1, :, :])
        srp2 = jnp.sum(acc_ref[2, :, :])
        srt2 = jnp.sum(acc_ref[3, :, :])
        srprt = jnp.sum(acc_ref[4, :, :])
        cov = srprt - srp * srt / m
        norm_p = jnp.sqrt(jnp.maximum(srp2 - srp * srp / m, 0.0))
        norm_t = jnp.sqrt(jnp.maximum(srt2 - srt * srt / m, 0.0))
        corr = cov / ((norm_p + 1e-8) * (norm_t + 1e-8))
        out_ref[0, 0] = jnp.abs(corr)


# ------------------------------- list_mle -----------------------------------
def _list_mle_kernel(ps_ref, out_ref, carry_ref, lacc_ref, *, b_true, n_true, tn):
    j = pl.program_id(0)
    n_chunks = pl.num_programs(0)

    @pl.when(j == 0)
    def _():
        carry_ref[...] = jnp.zeros_like(carry_ref)
        lacc_ref[...] = jnp.zeros_like(lacc_ref)

    ps = ps_ref[...].astype(jnp.float32)           # (B_pad, TN); pad value -1e30
    col = lax.broadcasted_iota(jnp.int32, ps.shape, 1)

    # TODO(synk): raw exp (no max-subtraction) is faithful to the torch source
    # but overflows f32 for ps >~ 88; a log-sum-exp form would change semantics.
    e = jnp.exp(ps)                                # padded entries -> exp(-1e30) = 0

    # Chunk-local inclusive cumsum: Hillis-Steele log-step scan (XLU roll + VPU
    # masked add) -- replaces the (TN, TN) f32 triangular matmul.
    c = e
    shift = 1
    while shift < tn:
        rolled = pltpu.roll(c, shift, axis=1)      # rolled[:, k] = c[:, k - shift]
        c = c + jnp.where(col >= shift, rolled, 0.0)
        shift *= 2
    c = c + carry_ref[...]                         # (B_pad, TN) + (B_pad, 1)
    carry_ref[...] = c[:, tn - 1:tn]               # per-row running total

    row = lax.broadcasted_iota(jnp.int32, ps.shape, 0)
    valid = (row < b_true) & (col + j * tn < n_true)
    lacc_ref[...] += jnp.where(valid, jnp.log(c + 1e-8) - ps, 0.0)

    @pl.when(j == n_chunks - 1)
    def _():
        # ICLoss: loss.sum(-1).mean() over batch; InverseICLoss negates.
        out_ref[0, 0] = -(jnp.sum(lacc_ref[...]) / float(b_true))


# --------------------------------- wrapper ----------------------------------
def inverse_ic_loss(predictions, targets, ic_type, *, vmem_budget_bytes=_VMEM_BUDGET):
    assert ic_type in ("spearman", "list_mle")
    targ = jnp.squeeze(targets, axis=-1)           # (B, N)
    B, N = predictions.shape
    sub = max(_sublane(predictions.dtype), _sublane(targ.dtype))
    B_pad = pl.cdiv(B, sub) * sub

    out_shape = jax.ShapeDtypeStruct((1, 1), jnp.float32)
    smem_out = pl.BlockSpec((1, 1), lambda *_: (0, 0),
                            memory_space=pltpu.MemorySpace.SMEM)

    if ic_type == "spearman":
        ip = predictions.dtype.itemsize
        it = targ.dtype.itemsize
        N_lane = pl.cdiv(N, _LANE) * _LANE
        # Single-HBM-pass path: both padded inputs plus ~10 f32 temporaries.
        single_bytes = B_pad * N_lane * (ip + it + 10 * 4)
        if single_bytes <= vmem_budget_bytes:
            pad = ((0, B_pad - B), (0, N_lane - N))
            pred_p = jnp.pad(predictions, pad)     # native dtype, zero pad
            targ_p = jnp.pad(targ, pad)
            kernel = functools.partial(_spearman_single_kernel, b_true=B, n_true=N)
            out = pl.pallas_call(
                kernel,
                out_shape=out_shape,
                grid=(1,),
                in_specs=[pl.BlockSpec((B_pad, N_lane), lambda i: (0, 0)),
                          pl.BlockSpec((B_pad, N_lane), lambda i: (0, 0))],
                out_specs=smem_out,
                compiler_params=pltpu.CompilerParams(
                    dimension_semantics=("arbitrary",),
                    vmem_limit_bytes=_VMEM_LIMIT_BYTES),
                cost_estimate=pl.CostEstimate(
                    flops=int(20 * B_pad * N_lane),
                    transcendentals=int(2 * B_pad * N_lane),
                    bytes_accessed=int(B_pad * N_lane * (ip + it) + 4)),
            )(pred_p, targ_p)
        else:
            # Streaming fallback: two passes over HBM (raw moments, then ranks).
            per_col = B_pad * (2 * (ip + it) + 5 * 4 + 6 * 4)
            N_pad, TN = _pick_tiling(N, per_col, vmem_budget_bytes)
            pad = ((0, B_pad - B), (0, N_pad - N))
            pred_p = jnp.pad(predictions, pad)
            targ_p = jnp.pad(targ, pad)
            n_tiles = N_pad // TN
            kernel = functools.partial(_spearman_stream_kernel,
                                       b_true=B, n_true=N, tn=TN)
            out = pl.pallas_call(
                kernel,
                out_shape=out_shape,
                grid=(2, n_tiles),                 # (phase, N-tile)
                in_specs=[pl.BlockSpec((B_pad, TN), lambda ph, j: (0, j)),
                          pl.BlockSpec((B_pad, TN), lambda ph, j: (0, j))],
                out_specs=smem_out,
                scratch_shapes=[pltpu.VMEM((5, B_pad, TN), jnp.float32),
                                pltpu.SMEM((4,), jnp.float32)],
                compiler_params=pltpu.CompilerParams(
                    dimension_semantics=("arbitrary", "arbitrary"),
                    vmem_limit_bytes=_VMEM_LIMIT_BYTES),
                cost_estimate=pl.CostEstimate(
                    flops=int(16 * B_pad * N_pad),
                    transcendentals=int(2 * B_pad * N_pad),
                    bytes_accessed=int(2 * B_pad * N_pad * (ip + it) + 4)),
            )(pred_p, targ_p)
    else:
        # TODO(synk): torch.sort/gather has no clean Pallas equivalent; the
        # descending argsort + gather stay as JAX glue outside the kernel.
        idx = jnp.argsort(targ, axis=-1, descending=True)
        pred_sorted = jnp.take_along_axis(predictions, idx, axis=1)
        ip = pred_sorted.dtype.itemsize
        per_col = B_pad * (2 * ip + 4 + 6 * 4)     # dbl-buffered input + lacc + temps
        N_pad, TN = _pick_tiling(N, per_col, vmem_budget_bytes)
        pad = ((0, B_pad - B), (0, N_pad - N))
        # Pad with a large negative so exp(pad) == 0: no mask needed in the scan.
        ps_p = jnp.pad(pred_sorted, pad, constant_values=-1e30)
        n_chunks = N_pad // TN
        kernel = functools.partial(_list_mle_kernel, b_true=B, n_true=N, tn=TN)
        out = pl.pallas_call(
            kernel,
            out_shape=out_shape,
            grid=(n_chunks,),
            in_specs=[pl.BlockSpec((B_pad, TN), lambda j: (0, j))],
            out_specs=smem_out,
            scratch_shapes=[pltpu.VMEM((B_pad, 1), jnp.float32),    # cumsum carry
                            pltpu.VMEM((B_pad, TN), jnp.float32)],  # loss accumulator
            compiler_params=pltpu.CompilerParams(
                dimension_semantics=("arbitrary",),
                vmem_limit_bytes=_VMEM_LIMIT_BYTES),
            cost_estimate=pl.CostEstimate(
                flops=int(B_pad * N_pad * (3 * TN.bit_length() + 8)),
                transcendentals=int(2 * B_pad * N_pad),
                bytes_accessed=int(B_pad * N_pad * ip + 4)),
        )(ps_p)

    return out[0, 0]


# ------------------------- pure-JAX reference check -------------------------
def _ref_inverse_ic_loss(predictions, targets, ic_type):
    targ = jnp.squeeze(targets, axis=-1)
    if ic_type == "spearman":
        def soft_rank(x):
            mean = jnp.mean(x)
            std = jnp.std(x, ddof=1)
            return 1.0 / (1.0 + jnp.exp(-1.83 * ((x - mean) / 2.0 * std)))
        rp = soft_rank(predictions)
        rt = soft_rank(targ)
        pn = rp - jnp.mean(rp)
        tn = rt - jnp.mean(rt)
        pn = pn / (jnp.linalg.norm(pn) + 1e-8)
        tn = tn / (jnp.linalg.norm(tn) + 1e-8)
        corr = jnp.sum(pn * tn)
        return -(-jnp.abs(corr))
    idx = jnp.argsort(targ, axis=-1, descending=True)
    ps = jnp.take_along_axis(predictions, idx, axis=1)
    c = jnp.cumsum(jnp.exp(ps), axis=-1)
    loss = jnp.log(c + 1e-8) - ps
    return -jnp.mean(jnp.sum(loss, axis=-1))


if __name__ == "__main__":
    key = jax.random.PRNGKey(0)
    ok = True
    # (8,16): tiny demo shape (single-block / single-chunk fast paths).
    # (4,700): padding/masking; with the forced tiny budget it also exercises
    # the streamed spearman fallback and the multi-chunk cumsum carry.
    for (B, N) in ((8, 16), (4, 700)):
        kp, kt, key = jax.random.split(key, 3)
        predictions = jax.random.normal(kp, (B, N), dtype=jnp.float32)
        targets = jax.random.normal(kt, (B, N, 1), dtype=jnp.float32)
        for ic_type in ("spearman", "list_mle"):
            ref = _ref_inverse_ic_loss(predictions, targets, ic_type)
            for budget in (_VMEM_BUDGET, 64 * 1024):   # default + forced-streaming
                out = jax.block_until_ready(
                    inverse_ic_loss(predictions, targets, ic_type,
                                    vmem_budget_bytes=budget))
                if not jnp.allclose(out, ref, rtol=1e-4, atol=1e-4):
                    ok = False
                    print(f"MISMATCH [{ic_type} B={B} N={N} budget={budget}]: "
                          f"kernel={out} ref={ref}")
    if ok:
        print("KERNEL_OK")
</pallas_src>

<mosaic_0001>
module attributes {stable_mosaic.version = 11 : i64} {
  func.func @_spearman_single_kernel(%arg0: i32, %arg1: memref<8x128xf32, #tpu.memory_space<vmem>>, %arg2: memref<8x128xf32, #tpu.memory_space<vmem>>, %arg3: memref<1x1xf32, #tpu.memory_space<smem>>) attributes {dimension_semantics = [#tpu.dimension_semantics<arbitrary>], iteration_bounds = array<i64: 1>, scalar_prefetch = 0 : i64, scratch_operands = 0 : i64, tpu.core_type = #tpu.core_type<tc>, window_params = [{pipeline_mode = #tpu.pipeline_mode<synchronous>, transform_indices = @transform_0, window_bounds = array<i64: 8, 128>}, {pipeline_mode = #tpu.pipeline_mode<synchronous>, transform_indices = @transform_1, window_bounds = array<i64: 8, 128>}, {transform_indices = @transform_2, window_bounds = array<i64: 1, 1>}]} {
    %c0 = arith.constant 0 : index
    %c0_0 = arith.constant 0 : index
    %0 = vector.load %arg1[%c0, %c0_0] : memref<8x128xf32, #tpu.memory_space<vmem>>, vector<8x128xf32>
    %c0_1 = arith.constant 0 : index
    %c0_2 = arith.constant 0 : index
    %1 = vector.load %arg2[%c0_1, %c0_2] : memref<8x128xf32, #tpu.memory_space<vmem>>, vector<8x128xf32>
    %2 = tpu.iota {dimensions = array<i32: 0>} : vector<8x128xi32>
    %3 = tpu.iota {dimensions = array<i32: 1>} : vector<8x128xi32>
    %c8_i32 = arith.constant 8 : i32
    %4 = vector.broadcast %c8_i32 : i32 to vector<8x128xi32>
    %5 = arith.cmpi slt, %2, %4 : vector<8x128xi32>
    %c16_i32 = arith.constant 16 : i32
    %6 = vector.broadcast %c16_i32 : i32 to vector<8x128xi32>
    %7 = arith.cmpi slt, %3, %6 : vector<8x128xi32>
    %8 = arith.andi %5, %7 : vector<8x128xi1>
    %9 = vector.shape_cast %0 : vector<8x128xf32> to vector<1x8x128xf32>
    %cst = arith.constant dense<0.000000e+00> : vector<1xf32>
    %10 = vector.multi_reduction <add>, %9, %cst [1, 2] : vector<1x8x128xf32> to vector<1xf32>
    %11 = vector.shape_cast %10 : vector<1xf32> to vector<1x1x1xf32>
    %12 = vector.extract %11[0, 0, 0] : f32 from vector<1x1x1xf32>
    %cst_3 = arith.constant 1.280000e+02 : f32
    %13 = arith.divf %12, %cst_3 : f32
    %14 = vector.shape_cast %1 : vector<8x128xf32> to vector<1x8x128xf32>
    %cst_4 = arith.constant dense<0.000000e+00> : vector<1xf32>
    %15 = vector.multi_reduction <add>, %14, %cst_4 [1, 2] : vector<1x8x128xf32> to vector<1xf32>
    %16 = vector.shape_cast %15 : vector<1xf32> to vector<1x1x1xf32>
    %17 = vector.extract %16[0, 0, 0] : f32 from vector<1x1x1xf32>
    %cst_5 = arith.constant 1.280000e+02 : f32
    %18 = arith.divf %17, %cst_5 : f32
    %19 = vector.broadcast %13 : f32 to vector<8x128xf32>
    %20 = arith.subf %0, %19 : vector<8x128xf32>
    %cst_6 = arith.constant 0.000000e+00 : f32
    %21 = vector.broadcast %cst_6 : f32 to vector<8x128xf32>
    %22 = arith.select %8, %20, %21 : vector<8x128xi1>, vector<8x128xf32>
    %23 = vector.broadcast %18 : f32 to vector<8x128xf32>
    %24 = arith.subf %1, %23 : vector<8x128xf32>
    %cst_7 = arith.constant 0.000000e+00 : f32
    %25 = vector.broadcast %cst_7 : f32 to vector<8x128xf32>
    %26 = arith.select %8, %24, %25 : vector<8x128xi1>, vector<8x128xf32>
    %27 = arith.mulf %22, %22 : vector<8x128xf32>
    %28 = vector.shape_cast %27 : vector<8x128xf32> to vector<1x8x128xf32>
    %cst_8 = arith.constant dense<0.000000e+00> : vector<1xf32>
    %29 = vector.multi_reduction <add>, %28, %cst_8 [1, 2] : vector<1x8x128xf32> to vector<1xf32>
    %30 = vector.shape_cast %29 : vector<1xf32> to vector<1x1x1xf32>
    %31 = vector.extract %30[0, 0, 0] : f32 from vector<1x1x1xf32>
    %cst_9 = arith.constant 1.270000e+02 : f32
    %32 = arith.divf %31, %cst_9 : f32
    %33 = math.sqrt %32 : f32
    %34 = arith.mulf %26, %26 : vector<8x128xf32>
    %35 = vector.shape_cast %34 : vector<8x128xf32> to vector<1x8x128xf32>
    %cst_10 = arith.constant dense<0.000000e+00> : vector<1xf32>
    %36 = vector.multi_reduction <add>, %35, %cst_10 [1, 2] : vector<1x8x128xf32> to vector<1xf32>
    %37 = vector.shape_cast %36 : vector<1xf32> to vector<1x1x1xf32>
    %38 = vector.extract %37[0, 0, 0] : f32 from vector<1x1x1xf32>
    %cst_11 = arith.constant 1.270000e+02 : f32
    %39 = arith.divf %38, %cst_11 : f32
    %40 = math.sqrt %39 : f32
    %cst_12 = arith.constant 4.575000e-01 : f32
    %41 = vector.broadcast %cst_12 : f32 to vector<8x128xf32>
    %42 = arith.mulf %41, %22 : vector<8x128xf32>
    %43 = vector.broadcast %33 : f32 to vector<8x128xf32>
    %44 = arith.mulf %42, %43 : vector<8x128xf32>
    %45 = math.tanh %44 : vector<8x128xf32>
    %cst_13 = arith.constant 1.000000e+00 : f32
    %46 = vector.broadcast %cst_13 : f32 to vector<8x128xf32>
    %47 = arith.addf %46, %45 : vector<8x128xf32>
    %cst_14 = arith.constant 5.000000e-01 : f32
    %48 = vector.broadcast %cst_14 : f32 to vector<8x128xf32>
    %49 = arith.mulf %48, %47 : vector<8x128xf32>
    %cst_15 = arith.constant 0.000000e+00 : f32
    %50 = vector.broadcast %cst_15 : f32 to vector<8x128xf32>
    %51 = arith.select %8, %49, %50 : vector<8x128xi1>, vector<8x128xf32>
    %cst_16 = arith.constant 4.575000e-01 : f32
    %52 = vector.broadcast %cst_16 : f32 to vector<8x128xf32>
    %53 = arith.mulf %52, %26 : vector<8x128xf32>
    %54 = vector.broadcast %40 : f32 to vector<8x128xf32>
    %55 = arith.mulf %53, %54 : vector<8x128xf32>
    %56 = math.tanh %55 : vector<8x128xf32>
    %cst_17 = arith.constant 1.000000e+00 : f32
    %57 = vector.broadcast %cst_17 : f32 to vector<8x128xf32>
    %58 = arith.addf %57, %56 : vector<8x128xf32>
    %cst_18 = arith.constant 5.000000e-01 : f32
    %59 = vector.broadcast %cst_18 : f32 to vector<8x128xf32>
    %60 = arith.mulf %59, %58 : vector<8x128xf32>
    %cst_19 = arith.constant 0.000000e+00 : f32
    %61 = vector.broadcast %cst_19 : f32 to vector<8x128xf32>
    %62 = arith.select %8, %60, %61 : vector<8x128xi1>, vector<8x128xf32>
    %63 = vector.shape_cast %51 : vector<8x128xf32> to vector<1x8x128xf32>
    %cst_20 = arith.constant dense<0.000000e+00> : vector<1xf32>
    %64 = vector.multi_reduction <add>, %63, %cst_20 [1, 2] : vector<1x8x128xf32> to vector<1xf32>
    %65 = vector.shape_cast %64 : vector<1xf32> to vector<1x1x1xf32>
    %66 = vector.extract %65[0, 0, 0] : f32 from vector<1x1x1xf32>
    %cst_21 = arith.constant 1.280000e+02 : f32
    %67 = arith.divf %66, %cst_21 : f32
    %68 = vector.broadcast %67 : f32 to vector<8x128xf32>
    %69 = arith.subf %51, %68 : vector<8x128xf32>
    %cst_22 = arith.constant 0.000000e+00 : f32
    %70 = vector.broadcast %cst_22 : f32 to vector<8x128xf32>
    %71 = arith.select %8, %69, %70 : vector<8x128xi1>, vector<8x128xf32>
    %72 = vector.shape_cast %62 : vector<8x128xf32> to vector<1x8x128xf32>
    %cst_23 = arith.constant dense<0.000000e+00> : vector<1xf32>
    %73 = vector.multi_reduction <add>, %72, %cst_23 [1, 2] : vector<1x8x128xf32> to vector<1xf32>
    %74 = vector.shape_cast %73 : vector<1xf32> to vector<1x1x1xf32>
    %75 = vector.extract %74[0, 0, 0] : f32 from vector<1x1x1xf32>
    %cst_24 = arith.constant 1.280000e+02 : f32
    %76 = arith.divf %75, %cst_24 : f32
    %77 = vector.broadcast %76 : f32 to vector<8x128xf32>
    %78 = arith.subf %62, %77 : vector<8x128xf32>
    %cst_25 = arith.constant 0.000000e+00 : f32
    %79 = vector.broadcast %cst_25 : f32 to vector<8x128xf32>
    %80 = arith.select %8, %78, %79 : vector<8x128xi1>, vector<8x128xf32>
    %81 = arith.mulf %71, %71 : vector<8x128xf32>
    %82 = vector.shape_cast %81 : vector<8x128xf32> to vector<1x8x128xf32>
    %cst_26 = arith.constant dense<0.000000e+00> : vector<1xf32>
    %83 = vector.multi_reduction <add>, %82, %cst_26 [1, 2] : vector<1x8x128xf32> to vector<1xf32>
    %84 = vector.shape_cast %83 : vector<1xf32> to vector<1x1x1xf32>
    %85 = vector.extract %84[0, 0, 0] : f32 from vector<1x1x1xf32>
    %86 = math.sqrt %85 : f32
    %87 = arith.mulf %80, %80 : vector<8x128xf32>
    %88 = vector.shape_cast %87 : vector<8x128xf32> to vector<1x8x128xf32>
    %cst_27 = arith.constant dense<0.000000e+00> : vector<1xf32>
    %89 = vector.multi_reduction <add>, %88, %cst_27 [1, 2] : vector<1x8x128xf32> to vector<1xf32>
    %90 = vector.shape_cast %89 : vector<1xf32> to vector<1x1x1xf32>
    %91 = vector.extract %90[0, 0, 0] : f32 from vector<1x1x1xf32>
    %92 = math.sqrt %91 : f32
    %93 = arith.mulf %71, %80 : vector<8x128xf32>
    %94 = vector.shape_cast %93 : vector<8x128xf32> to vector<1x8x128xf32>
    %cst_28 = arith.constant dense<0.000000e+00> : vector<1xf32>
    %95 = vector.multi_reduction <add>, %94, %cst_28 [1, 2] : vector<1x8x128xf32> to vector<1xf32>
    %96 = vector.shape_cast %95 : vector<1xf32> to vector<1x1x1xf32>
    %97 = vector.extract %96[0, 0, 0] : f32 from vector<1x1x1xf32>
    %cst_29 = arith.constant 9.99999993E-9 : f32
    %98 = arith.addf %86, %cst_29 : f32
    %cst_30 = arith.constant 9.99999993E-9 : f32
    %99 = arith.addf %92, %cst_30 : f32
    %100 = arith.mulf %98, %99 : f32
    %101 = arith.divf %97, %100 : f32
    %102 = math.absf %101 : f32
    %c0_31 = arith.constant 0 : index
    %c0_32 = arith.constant 0 : index
    %103 = memref.load %arg3[%c0_31, %c0_32] : memref<1x1xf32, #tpu.memory_space<smem>>
    memref.store %102, %arg3[%c0_31, %c0_32] : memref<1x1xf32, #tpu.memory_space<smem>>
    return
  }
  func.func @transform_0(%arg0: i32) -> (i32, i32) {
    %c0_i32 = arith.constant 0 : i32
    %c0_i32_0 = arith.constant 0 : i32
    %c0_i32_1 = arith.constant 0 : i32
    return %c0_i32, %c0_i32_0 : i32, i32
  }
  func.func @transform_1(%arg0: i32) -> (i32, i32) {
    %c0_i32 = arith.constant 0 : i32
    %c0_i32_0 = arith.constant 0 : i32
    %c0_i32_1 = arith.constant 0 : i32
    return %c0_i32, %c0_i32_0 : i32, i32
  }
  func.func @transform_2(%arg0: i32) -> (i32, i32) {
    %c0_i32 = arith.constant 0 : i32
    %c0_i32_0 = arith.constant 0 : i32
    %c0_i32_1 = arith.constant 0 : i32
    return %c0_i32, %c0_i32_0 : i32, i32
  }
}

</mosaic_0001>

<llo_original>
// kernel: tpu_custom_call.1
$region0: #{tpu_custom_call.1}
  #allocation0 [shape = 'u32[]', space=smem, size = 0x4, offset = 0x4, fixed_abs, tag = 'smem constant byte address 0x4 - core index']
  #allocation1 [shape = 'u32[144,128]{1,0:T(1,128)}', space=vmem, size = 0x12000, scoped, tag = 'internal scratch']
  %s0 = inlined_call_operand.hbm [shape: f32[8,128], index: 0, kind: input, shape index: {}]
  %s1 = inlined_call_operand.hbm [shape: f32[8,128], index: 1, kind: input, shape index: {}]
  %s2 = inlined_call_operand.hbm [shape: f32[1,1], index: 2, kind: output, shape index: {}]
  %s3 = sld [smem:[#allocation0]]
  $region26: #{tpu_custom_call.1} parent=0
    _
  %s5 = ssub.s32 1, %s3
  %s6 = scalar_select 0, %s5, %s3
  $region1: #{tpu_custom_call.1} parent=0
    #allocation2 [shape = 'u8[4096]{0}', space=vmem, size = 0x1000, scoped, tag = 'input window, operand 0, single buffered']
    #allocation3 [shape = 's32[1]{0}', space=sflag, size = 0x4, scoped, tag = 'scoped memory for tpu_custom_call.1']
    #allocation4 [shape = 's32[1]{0}', space=sflag, size = 0x4, scoped, tag = 'scoped memory for tpu_custom_call.1']
    #allocation5 [shape = 'u8[4096]{0}', space=vmem, size = 0x1000, scoped, tag = 'input window, operand 1, single buffered']
    #allocation6 [shape = 's32[1]{0}', space=sflag, size = 0x4, scoped, tag = 'scoped memory for tpu_custom_call.1']
    #allocation7 [shape = 'u8[512]{0}', space=smem, size = 0x200, scoped, tag = 'output window, operand 0, single buffered']
    %7 = vsyncpa [#allocation3], 0
    %8 = vsyncpa [#allocation6], 0
    %9 = vsyncpa [#allocation4], 0
    // Predicated region
    $region2: #{tpu_custom_call.1} parent=1 // pred_check
      _
    $region3: #{tpu_custom_call.1} parent=1 // pred_check_branch
      %11 = sbr.rel (0) target = $region5
    $region4: #{tpu_custom_call.1} parent=1 // pred_region
      %s13 = ssub.s32 128, 128
      %14 = vsyncadd [#allocation3], %s13
      %s16 = sshll.u32 [#allocation2], 4
      %s17 = int_to_ptr.vmem [resolvable:$true] %s16
      %19 = dma.hbm_to_vmem [thread:$0]  %s0, 128, %s17, [#allocation3]
    $region5: #{tpu_custom_call.1} parent=1 // pred_fallthru
      _
    // Predicated region
    $region6: #{tpu_custom_call.1} parent=1 // pred_check
      _
    $region7: #{tpu_custom_call.1} parent=1 // pred_check_branch
      %21 = sbr.rel (0) target = $region9
    $region8: #{tpu_custom_call.1} parent=1 // pred_region
      %s23 = ssub.s32 128, 128
      %24 = vsyncadd [#allocation6], %s23
      %s26 = sshll.u32 [#allocation5], 4
      %s27 = int_to_ptr.vmem [resolvable:$true] %s26
      %29 = dma.hbm_to_vmem [thread:$0]  %s1, 128, %s27, [#allocation6]
    $region9: #{tpu_custom_call.1} parent=1 // pred_fallthru
      _
    // Predicated region
    $region10: #{tpu_custom_call.1} parent=1 // pred_check
      _
    $region11: #{tpu_custom_call.1} parent=1 // pred_check_branch
      %31 = sbr.rel (0) target = $region13
    $region12: #{tpu_custom_call.1} parent=1 // pred_region
      %32 = dma.done [#allocation3], 128
    $region13: #{tpu_custom_call.1} parent=1 // pred_fallthru
      _
    // Predicated region
    $region14: #{tpu_custom_call.1} parent=1 // pred_check
      _
    $region15: #{tpu_custom_call.1} parent=1 // pred_check_branch
      %34 = sbr.rel (0) target = $region17
    $region16: #{tpu_custom_call.1} parent=1 // pred_region
      %35 = dma.done [#allocation6], 128
    $region17: #{tpu_custom_call.1} parent=1 // pred_fallthru
      _
    %v36 = vld [vmem:[#allocation2] sm:$0xff]
    %v37 = vld [vmem:[#allocation5] sm:$0xff]
    %v38 = vlaneseq
    %v39 = vshrl.u32 %v38, 7
    %v40 = vlaneseq
    %v41 = vand.u32 %v40, 127
    %vm42 = vcmp.lt.s32.totalorder %v39, 8
    %vm43 = vcmp.lt.s32.totalorder %v41, 16
    %vm44 = vmand %vm42, %vm43
    %45 = vadd.xlane.f32.xlu0 %v36
    %v46 = vpop.xlane.xlu0 %45
    %v47 = vrot.slane %v46, 4
    %v48 = vadd.f32 %v46, %v47
    %v49 = vrot.slane %v48, 2
    %v50 = vadd.f32 %v48, %v49
    %v51 = vrot.slane %v50, 1
    %v52 = vadd.f32 %v50, %v51
    %s53 = vtos %v52
    %v54 = vrcp.pop 128.0
    %s55 = vtos %v54
    %s56 = smul.f32 %s53, %s55
    %57 = vadd.xlane.f32.xlu0 %v37
    %v58 = vpop.xlane.xlu0 %57
    %v59 = vrot.slane %v58, 4
    %v60 = vadd.f32 %v58, %v59
    %v61 = vrot.slane %v60, 2
    %v62 = vadd.f32 %v60, %v61
    %v63 = vrot.slane %v62, 1
    %v64 = vadd.f32 %v62, %v63
    %s65 = vtos %v64
    %v66 = vrcp.pop 128.0
    %s67 = vtos %v66
    %s68 = smul.f32 %s65, %s67
    %v69 = vstv %s56
    %v70 = vsub.f32 %v36, %v69
    %v71 = vsel %vm44, %v70, 0.0
    %v72 = vstv %s68
    %v73 = vsub.f32 %v37, %v72
    %v74 = vsel %vm44, %v73, 0.0
    %v75 = vmul.f32 %v71, %v71
    %76 = vadd.xlane.f32.xlu0 %v75
    %v77 = vpop.xlane.xlu0 %76
    %v78 = vrot.slane %v77, 4
    %v79 = vadd.f32 %v77, %v78
    %v80 = vrot.slane %v79, 2
    %v81 = vadd.f32 %v79, %v80
    %v82 = vrot.slane %v81, 1
    %v83 = vadd.f32 %v81, %v82
    %s84 = vtos %v83
    %v85 = vrcp.pop 127.0
    %s86 = vtos %v85
    %s87 = smul.f32 %s84, %s86
    %v88 = vstv %s87
    %v89 = vrsqrt.pop %v88
    %v90 = vmul.f32 %v88, %v89
    %vm91 = vcmp.eq.f32.partialorder %v88, inf
    %v92 = vsel %vm91, %v88, %v90
    %vm93 = vcmp.eq.f32.partialorder %v88, 0.0
    %v94 = vand.u32 %v88, 2147483648
    %v95 = vsel %vm93, %v94, %v92
    %s96 = vtos %v95
    %v97 = vmul.f32 %v74, %v74
    %98 = vadd.xlane.f32.xlu0 %v97
    %v99 = vpop.xlane.xlu0 %98
    %v100 = vrot.slane %v99, 4
    %v101 = vadd.f32 %v99, %v100
    %v102 = vrot.slane %v101, 2
    %v103 = vadd.f32 %v101, %v102
    %v104 = vrot.slane %v103, 1
    %v105 = vadd.f32 %v103, %v104
    %s106 = vtos %v105
    %v107 = vrcp.pop 127.0
    %s108 = vtos %v107
    %s109 = smul.f32 %s106, %s108
    %v110 = vstv %s109
    %v111 = vrsqrt.pop %v110
    %v112 = vmul.f32 %v110, %v111
    %vm113 = vcmp.eq.f32.partialorder %v110, inf
    %v114 = vsel %vm113, %v110, %v112
    %vm115 = vcmp.eq.f32.partialorder %v110, 0.0
    %v116 = vand.u32 %v110, 2147483648
    %v117 = vsel %vm115, %v116, %v114
    %s118 = vtos %v117
    %v119 = vmul.f32 %v71, 0.4575
    %v120 = vstv %s96
    %v121 = vmul.f32 %v119, %v120
    %v122 = vtanh.pop %v121
    %v123 = vadd.f32 %v122, 1.0
    %v124 = vmul.f32 %v123, 0.5
    %v125 = vsel %vm44, %v124, 0.0
    %v126 = vmul.f32 %v74, 0.4575
    %v127 = vstv %s118
    %v128 = vmul.f32 %v126, %v127
    %v129 = vtanh.pop %v128
    %v130 = vadd.f32 %v129, 1.0
    %v131 = vmul.f32 %v130, 0.5
    %v132 = vsel %vm44, %v131, 0.0
    %133 = vadd.xlane.f32.xlu0 %v125
    %v134 = vpop.xlane.xlu0 %133
    %v135 = vrot.slane %v134, 4
    %v136 = vadd.f32 %v134, %v135
    %v137 = vrot.slane %v136, 2
    %v138 = vadd.f32 %v136, %v137
    %v139 = vrot.slane %v138, 1
    %v140 = vadd.f32 %v138, %v139
    %s141 = vtos %v140
    %v142 = vrcp.pop 128.0
    %s143 = vtos %v142
    %s144 = smul.f32 %s141, %s143
    %v145 = vstv %s144
    %v146 = vsub.f32 %v125, %v145
    %v147 = vsel %vm44, %v146, 0.0
    %148 = vadd.xlane.f32.xlu0 %v132
    %v149 = vpop.xlane.xlu0 %148
    %v150 = vrot.slane %v149, 4
    %v151 = vadd.f32 %v149, %v150
    %v152 = vrot.slane %v151, 2
    %v153 = vadd.f32 %v151, %v152
    %v154 = vrot.slane %v153, 1
    %v155 = vadd.f32 %v153, %v154
    %s156 = vtos %v155
    %v157 = vrcp.pop 128.0
    %s158 = vtos %v157
    %s159 = smul.f32 %s156, %s158
    %v160 = vstv %s159
    %v161 = vsub.f32 %v132, %v160
    %v162 = vsel %vm44, %v161, 0.0
    %v163 = vmul.f32 %v147, %v147
    %164 = vadd.xlane.f32.xlu0 %v163
    %v165 = vpop.xlane.xlu0 %164
    %v166 = vrot.slane %v165, 4
    %v167 = vadd.f32 %v165, %v166
    %v168 = vrot.slane %v167, 2
    %v169 = vadd.f32 %v167, %v168
    %v170 = vrot.slane %v169, 1
    %v171 = vadd.f32 %v169, %v170
    %s172 = vtos %v171
    %v173 = vstv %s172
    %v174 = vrsqrt.pop %v173
    %v175 = vmul.f32 %v173, %v174
    %vm176 = vcmp.eq.f32.partialorder %v173, inf
    %v177 = vsel %vm176, %v173, %v175
    %vm178 = vcmp.eq.f32.partialorder %v173, 0.0
    %v179 = vand.u32 %v173, 2147483648
    %v180 = vsel %vm178, %v179, %v177
    %s181 = vtos %v180
    %v182 = vmul.f32 %v162, %v162
    %183 = vadd.xlane.f32.xlu0 %v182
    %v184 = vpop.xlane.xlu0 %183
    %v185 = vrot.slane %v184, 4
    %v186 = vadd.f32 %v184, %v185
    %v187 = vrot.slane %v186, 2
    %v188 = vadd.f32 %v186, %v187
    %v189 = vrot.slane %v188, 1
    %v190 = vadd.f32 %v188, %v189
    %s191 = vtos %v190
    %v192 = vstv %s191
    %v193 = vrsqrt.pop %v192
    %v194 = vmul.f32 %v192, %v193
    %vm195 = vcmp.eq.f32.partialorder %v192, inf
    %v196 = vsel %vm195, %v192, %v194
    %vm197 = vcmp.eq.f32.partialorder %v192, 0.0
    %v198 = vand.u32 %v192, 2147483648
    %v199 = vsel %vm197, %v198, %v196
    %s200 = vtos %v199
    %v201 = vmul.f32 %v147, %v162
    %202 = vadd.xlane.f32.xlu0 %v201
    %v203 = vpop.xlane.xlu0 %202
    %v204 = vrot.slane %v203, 4
    %v205 = vadd.f32 %v203, %v204
    %v206 = vrot.slane %v205, 2
    %v207 = vadd.f32 %v205, %v206
    %v208 = vrot.slane %v207, 1
    %v209 = vadd.f32 %v207, %v208
    %s210 = vtos %v209
    %s211 = sadd.f32 %s181, 1e-08
    %s212 = sadd.f32 %s200, 1e-08
    %s213 = smul.f32 %s211, %s212
    %v214 = vstv %s213
    %v215 = vrcp.pop %v214
    %s216 = vtos %v215
    %s217 = smul.f32 %s210, %s216
    %s218 = sand.u32 2147483647, %s217
    %s219 = scalar_lea.smem [#allocation7], 0
    %220 = sst [smem:[%s219]] %s218
    // Predicated region
    $region18: #{tpu_custom_call.1} parent=1 // pred_check
      _
    $region19: #{tpu_custom_call.1} parent=1 // pred_check_branch
      %222 = sbr.rel (0) target = $region21
    $region20: #{tpu_custom_call.1} parent=1 // pred_region
      %s224 = ssub.s32 16, 16
      %225 = vsyncadd [#allocation4], %s224
      %228 = dma.smem_to_hbm [#allocation7], 16, %s2, [#allocation4]
    $region21: #{tpu_custom_call.1} parent=1 // pred_fallthru
      _
    // Predicated region
    $region22: #{tpu_custom_call.1} parent=1 // pred_check
      _
    $region23: #{tpu_custom_call.1} parent=1 // pred_check_branch
      %230 = sbr.rel (0) target = $region25
    $region24: #{tpu_custom_call.1} parent=1 // pred_region
      %231 = dma.done [#allocation4], 16
    $region25: #{tpu_custom_call.1} parent=1 // pred_fallthru
      _
    %232 = sfence
    %233 = vsyncpa [#allocation3], 1
    %234 = vsyncpa [#allocation6], 1
    %235 = vsyncpa [#allocation4], 1

</llo_original>
